<compile_context>
chip_gen: v7x
topology: tpu7x:2x2x1
jax: 0.10.0
libtpu: 0.0.40
codegen_flags: <defaults>
</compile_context>

<pallas_src>
import functools

import jax
import jax.numpy as jnp
from jax.experimental import pallas as pl
from jax.experimental.pallas import tpu as pltpu

_LANE = 128


def _round_up(n, m):
    return ((n + m - 1) // m) * m


def _resident_spec(block_shape, single_buffer):
    """Spec for an operand pinned in VMEM across the whole grid (constant map)."""
    idx_map = lambda i: (0, 0)
    if single_buffer:
        try:
            # Constant index_map => never re-fetched; one buffer is enough.
            return pl.BlockSpec(block_shape, idx_map, pipeline_mode=pl.Buffered(1))
        except TypeError:
            pass  # older jax without pipeline_mode kwarg
    return pl.BlockSpec(block_shape, idx_map)


def _reward_kernel(x_ref, w1_ref, b1_ref, w2_ref, b2_ref, y_ref):
    # x tile streamed as f32; cast to bf16 on the VPU right before the MXU.
    x = x_ref[...].astype(jnp.bfloat16)
    # Layer 1: bf16 MXU operands, f32 accumulation; bias-add + ReLU in f32.
    h = jnp.dot(x, w1_ref[...], preferred_element_type=jnp.float32)
    h = jnp.maximum(h + b1_ref[...], 0.0)
    # Layer 2 (reward head): w2 is zero-padded to a lane-dense width so the
    # output store is unmasked and the MXU N dimension is not wasted.
    y = jnp.dot(h.astype(w2_ref.dtype), w2_ref[...],
                preferred_element_type=jnp.float32)
    y_ref[...] = (y + b2_ref[...]).astype(y_ref.dtype)


@functools.partial(jax.jit, static_argnames=("block_b", "single_buffer_weights"))
def reward_model_forward(x, params, *, block_b=512, single_buffer_weights=True):
    """Pallas TPU forward pass of RewardModel.

    params: dict with w1 [in, hidden], b1 [1, hidden], w2 [hidden, out],
    b2 [1, out] (float32). Returns y of shape [B, out], float32.
    """
    B, input_dim = x.shape
    hidden_dim = params["w1"].shape[1]
    output_dim = params["w2"].shape[1]
    out_pad = _round_up(max(output_dim, _LANE), _LANE)   # lane-dense output width

    # ---- batch tiling -------------------------------------------------------
    if B <= 16:
        tb = B                                 # single full-extent tile (legal)
    else:
        # at least two blocks so the "parallel" grid axis can shard across both
        # TensorCores on v7x; rows kept a multiple of 8 (sublanes).
        tb = max(8, min(block_b, _round_up(pl.cdiv(B, 2), 8)))
    n_blocks = pl.cdiv(B, tb)
    # No jnp.pad of x: if tb does not divide B, Pallas pads the last block
    # internally and drops out-of-range output writes (no extra HBM pass).

    # ---- weights: bf16 MXU operands, f32 biases; w2/b2 zero-padded to out_pad
    w1 = params["w1"].astype(jnp.bfloat16)
    b1 = params["b1"].reshape(1, hidden_dim).astype(jnp.float32)
    w2 = jnp.zeros((hidden_dim, out_pad), jnp.bfloat16)
    w2 = w2.at[:, :output_dim].set(params["w2"].astype(jnp.bfloat16))
    b2 = jnp.zeros((1, out_pad), jnp.float32)
    b2 = b2.at[:, :output_dim].set(
        params["b2"].reshape(1, output_dim).astype(jnp.float32))

    # ---- VMEM budget (exact accounting, generation-aware cap) ---------------
    w_bufs = 1 if single_buffer_weights else 2
    resident = w_bufs * (input_dim * hidden_dim * 2 + hidden_dim * 4
                         + hidden_dim * out_pad * 2 + out_pad * 4)
    streamed = 2 * tb * input_dim * 4 + 2 * tb * out_pad * 4     # x / y, 2 bufs
    temps = tb * hidden_dim * 4 + tb * hidden_dim * 2 + tb * input_dim * 2
    budget = resident + streamed + temps + (4 << 20)             # + headroom
    try:
        vmem_cap = pltpu.get_tpu_info().vmem_capacity_bytes
    except Exception:
        vmem_cap = 64 << 20                                      # v7x per-TC floor
    vmem_limit = int(min(max(budget, 16 << 20), (vmem_cap * 3) // 4))
    # TODO(synk): if bf16 w1 alone exceeds this budget (very large
    # input_dim*hidden_dim on v7x), add a K (input_dim) grid axis with an f32
    # accumulator scratch (P3 init/finalize) instead of relying on spills.

    flops = 2 * B * (input_dim * hidden_dim + hidden_dim * out_pad)
    bytes_accessed = B * input_dim * 4 + resident + B * out_pad * 4

    y = pl.pallas_call(
        _reward_kernel,
        out_shape=jax.ShapeDtypeStruct((B, out_pad), jnp.float32),
        grid=(n_blocks,),
        in_specs=[
            pl.BlockSpec((tb, input_dim), lambda i: (i, 0)),          # x (streamed f32)
            _resident_spec((input_dim, hidden_dim), single_buffer_weights),  # w1
            _resident_spec((1, hidden_dim), single_buffer_weights),          # b1
            _resident_spec((hidden_dim, out_pad), single_buffer_weights),    # w2 (padded)
            _resident_spec((1, out_pad), single_buffer_weights),             # b2 (padded)
        ],
        out_specs=pl.BlockSpec((tb, out_pad), lambda i: (i, 0)),
        compiler_params=pltpu.CompilerParams(
            dimension_semantics=("parallel",),     # megacore sharding on v7x
            vmem_limit_bytes=vmem_limit,
        ),
        cost_estimate=pl.CostEstimate(
            flops=int(flops), transcendentals=0,
            bytes_accessed=int(bytes_accessed)),
    )(x, w1, b1, w2, b2)

    return y[:, :output_dim]


def init_params(key, input_dim, hidden_dim, output_dim=1):
    """Deterministic PyTorch-style (uniform +-1/sqrt(fan_in)) init, float32."""
    def linear(k, fan_in, fan_out):
        kw, kb = jax.random.split(k)
        bound = 1.0 / jnp.sqrt(jnp.float32(fan_in))
        w = jax.random.uniform(kw, (fan_in, fan_out), jnp.float32, -bound, bound)
        b = jax.random.uniform(kb, (1, fan_out), jnp.float32, -bound, bound)
        return w, b

    k1, k2 = jax.random.split(key)
    w1, b1 = linear(k1, input_dim, hidden_dim)
    w2, b2 = linear(k2, hidden_dim, output_dim)
    return {"w1": w1, "b1": b1, "w2": w2, "b2": b2}


def _reference_forward_bf16(x, p):
    # Same bf16-operand / f32-accumulate recipe as the kernel.
    h = jnp.dot(x.astype(jnp.bfloat16), p["w1"].astype(jnp.bfloat16),
                preferred_element_type=jnp.float32) + p["b1"]
    h = jnp.maximum(h, 0.0)
    return jnp.dot(h.astype(jnp.bfloat16), p["w2"].astype(jnp.bfloat16),
                   preferred_element_type=jnp.float32) + p["b2"]


def _reference_forward_f32(x, p):
    # Exact f32 semantics of the PyTorch RewardModel.
    h = jnp.maximum(x @ p["w1"] + p["b1"], 0.0)
    return h @ p["w2"] + p["b2"]


if __name__ == "__main__":
    batch = 8
    input_dim = 16
    hidden_dim = 32
    output_dim = 1

    key = jax.random.PRNGKey(0)
    kx, kp = jax.random.split(key)
    x = jax.random.normal(kx, (batch, input_dim), jnp.float32)
    params = init_params(kp, input_dim, hidden_dim, output_dim)

    try:
        y = reward_model_forward(x, params)
    except Exception:
        # Fallback for jax builds where pl.Buffered(1) single-buffered weights
        # are not supported by the TPU lowering: use default double-buffering.
        y = reward_model_forward(x, params, single_buffer_weights=False)
    jax.block_until_ready(y)

    assert y.shape == (batch, output_dim)
    # Exact-recipe check (bf16 operands, f32 accumulation).
    assert jnp.allclose(y, _reference_forward_bf16(x, params), atol=1e-3, rtol=1e-3)
    # Sanity check against the true f32 PyTorch forward (loose tol for bf16 MXU).
    assert jnp.allclose(y, _reference_forward_f32(x, params), atol=5e-2, rtol=5e-2)

    print("KERNEL_OK")
</pallas_src>

<mosaic_0001>
module attributes {stable_mosaic.version = 11 : i64} {
  func.func @_reward_kernel(%arg0: i32, %arg1: memref<8x16xf32, #tpu.memory_space<vmem>>, %arg2: memref<16x32xbf16, #tpu.memory_space<vmem>>, %arg3: memref<1x32xf32, #tpu.memory_space<vmem>>, %arg4: memref<32x128xbf16, #tpu.memory_space<vmem>>, %arg5: memref<1x128xf32, #tpu.memory_space<vmem>>, %arg6: memref<8x128xf32, #tpu.memory_space<vmem>>) attributes {dimension_semantics = [#tpu.dimension_semantics<parallel>], iteration_bounds = array<i64: 1>, scalar_prefetch = 0 : i64, scratch_operands = 0 : i64, tpu.core_type = #tpu.core_type<tc>, window_params = [{transform_indices = @transform_0, window_bounds = array<i64: 8, 16>}, {pipeline_mode = #tpu.pipeline_mode<synchronous>, transform_indices = @transform_1, window_bounds = array<i64: 16, 32>}, {pipeline_mode = #tpu.pipeline_mode<synchronous>, transform_indices = @transform_2, window_bounds = array<i64: 1, 32>}, {pipeline_mode = #tpu.pipeline_mode<synchronous>, transform_indices = @transform_3, window_bounds = array<i64: 32, 128>}, {pipeline_mode = #tpu.pipeline_mode<synchronous>, transform_indices = @transform_4, window_bounds = array<i64: 1, 128>}, {transform_indices = @transform_5, window_bounds = array<i64: 8, 128>}]} {
    %c0 = arith.constant 0 : index
    %c0_0 = arith.constant 0 : index
    %0 = vector.load %arg1[%c0, %c0_0] : memref<8x16xf32, #tpu.memory_space<vmem>>, vector<8x16xf32>
    %1 = arith.truncf %0 : vector<8x16xf32> to vector<8x16xbf16>
    %c0_1 = arith.constant 0 : index
    %c0_2 = arith.constant 0 : index
    %2 = vector.load %arg2[%c0_1, %c0_2] : memref<16x32xbf16, #tpu.memory_space<vmem>>, vector<16x32xbf16>
    %cst = arith.constant dense<0.000000e+00> : vector<8x32xf32>
    %3 = tpu.matmul %1, %2, %cst {dimension_numbers = #tpu.dot_dimension_numbers<[1], [0], [0], [1], [0, 0, 1, 1], [], []>} : vector<8x16xbf16>, vector<16x32xbf16>, vector<8x32xf32> -> vector<8x32xf32>
    %c0_3 = arith.constant 0 : index
    %c0_4 = arith.constant 0 : index
    %4 = vector.load %arg3[%c0_3, %c0_4] : memref<1x32xf32, #tpu.memory_space<vmem>>, vector<1x32xf32>
    %5 = vector.broadcast %4 : vector<1x32xf32> to vector<8x32xf32>
    %6 = arith.addf %3, %5 : vector<8x32xf32>
    %cst_5 = arith.constant 0.000000e+00 : f32
    %7 = vector.broadcast %cst_5 : f32 to vector<8x32xf32>
    %8 = arith.maximumf %6, %7 : vector<8x32xf32>
    %9 = arith.truncf %8 : vector<8x32xf32> to vector<8x32xbf16>
    %c0_6 = arith.constant 0 : index
    %c0_7 = arith.constant 0 : index
    %10 = vector.load %arg4[%c0_6, %c0_7] : memref<32x128xbf16, #tpu.memory_space<vmem>>, vector<32x128xbf16>
    %cst_8 = arith.constant dense<0.000000e+00> : vector<8x128xf32>
    %11 = tpu.matmul %9, %10, %cst_8 {dimension_numbers = #tpu.dot_dimension_numbers<[1], [0], [0], [1], [0, 0, 1, 1], [], []>} : vector<8x32xbf16>, vector<32x128xbf16>, vector<8x128xf32> -> vector<8x128xf32>
    %c0_9 = arith.constant 0 : index
    %c0_10 = arith.constant 0 : index
    %12 = vector.load %arg5[%c0_9, %c0_10] : memref<1x128xf32, #tpu.memory_space<vmem>>, vector<1x128xf32>
    %13 = vector.broadcast %12 : vector<1x128xf32> to vector<8x128xf32>
    %14 = arith.addf %11, %13 : vector<8x128xf32>
    %c0_11 = arith.constant 0 : index
    %c0_12 = arith.constant 0 : index
    %15 = vector.load %arg6[%c0_11, %c0_12] : memref<8x128xf32, #tpu.memory_space<vmem>>, vector<8x128xf32>
    tpu.vector_store %arg6[%c0_11, %c0_12], %14 {strides = array<i32>} : memref<8x128xf32, #tpu.memory_space<vmem>>, vector<8x128xf32>,
    return
  }
  func.func @transform_0(%arg0: i32) -> (i32, i32) {
    %c0_i32 = arith.constant 0 : i32
    %c0_i32_0 = arith.constant 0 : i32
    return %arg0, %c0_i32 : i32, i32
  }
  func.func @transform_1(%arg0: i32) -> (i32, i32) {
    %c0_i32 = arith.constant 0 : i32
    %c0_i32_0 = arith.constant 0 : i32
    %c0_i32_1 = arith.constant 0 : i32
    return %c0_i32, %c0_i32_0 : i32, i32
  }
  func.func @transform_2(%arg0: i32) -> (i32, i32) {
    %c0_i32 = arith.constant 0 : i32
    %c0_i32_0 = arith.constant 0 : i32
    %c0_i32_1 = arith.constant 0 : i32
    return %c0_i32, %c0_i32_0 : i32, i32
  }
  func.func @transform_3(%arg0: i32) -> (i32, i32) {
    %c0_i32 = arith.constant 0 : i32
    %c0_i32_0 = arith.constant 0 : i32
    %c0_i32_1 = arith.constant 0 : i32
    return %c0_i32, %c0_i32_0 : i32, i32
  }
  func.func @transform_4(%arg0: i32) -> (i32, i32) {
    %c0_i32 = arith.constant 0 : i32
    %c0_i32_0 = arith.constant 0 : i32
    %c0_i32_1 = arith.constant 0 : i32
    return %c0_i32, %c0_i32_0 : i32, i32
  }
  func.func @transform_5(%arg0: i32) -> (i32, i32) {
    %c0_i32 = arith.constant 0 : i32
    %c0_i32_0 = arith.constant 0 : i32
    return %arg0, %c0_i32 : i32, i32
  }
}

module attributes {stable_mosaic.version = 11 : i64} {
  func.func @_reward_kernel(%arg0: i32, %arg1: memref<8x16xf32, #tpu.memory_space<vmem>>, %arg2: memref<16x32xbf16, #tpu.memory_space<vmem>>, %arg3: memref<1x32xf32, #tpu.memory_space<vmem>>, %arg4: memref<32x128xbf16, #tpu.memory_space<vmem>>, %arg5: memref<1x128xf32, #tpu.memory_space<vmem>>, %arg6: memref<8x128xf32, #tpu.memory_space<vmem>>) attributes {dimension_semantics = [#tpu.dimension_semantics<parallel>], iteration_bounds = array<i64: 1>, scalar_prefetch = 0 : i64, scratch_operands = 0 : i64, tpu.core_type = #tpu.core_type<tc>, window_params = [{transform_indices = @transform_0, window_bounds = array<i64: 8, 16>}, {pipeline_mode = #tpu.pipeline_mode<synchronous>, transform_indices = @transform_1, window_bounds = array<i64: 16, 32>}, {pipeline_mode = #tpu.pipeline_mode<synchronous>, transform_indices = @transform_2, window_bounds = array<i64: 1, 32>}, {pipeline_mode = #tpu.pipeline_mode<synchronous>, transform_indices = @transform_3, window_bounds = array<i64: 32, 128>}, {pipeline_mode = #tpu.pipeline_mode<synchronous>, transform_indices = @transform_4, window_bounds = array<i64: 1, 128>}, {transform_indices = @transform_5, window_bounds = array<i64: 8, 128>}]} {
    %c0 = arith.constant 0 : index
    %c0_0 = arith.constant 0 : index
    %0 = vector.load %arg1[%c0, %c0_0] : memref<8x16xf32, #tpu.memory_space<vmem>>, vector<8x16xf32>
    %1 = arith.truncf %0 : vector<8x16xf32> to vector<8x16xbf16>
    %c0_1 = arith.constant 0 : index
    %c0_2 = arith.constant 0 : index
    %2 = vector.load %arg2[%c0_1, %c0_2] : memref<16x32xbf16, #tpu.memory_space<vmem>>, vector<16x32xbf16>
    %cst = arith.constant dense<0.000000e+00> : vector<8x32xf32>
    %3 = tpu.matmul %1, %2, %cst {dimension_numbers = #tpu.dot_dimension_numbers<[1], [0], [0], [1], [0, 0, 1, 1], [], []>} : vector<8x16xbf16>, vector<16x32xbf16>, vector<8x32xf32> -> vector<8x32xf32>
    %c0_3 = arith.constant 0 : index
    %c0_4 = arith.constant 0 : index
    %4 = vector.load %arg3[%c0_3, %c0_4] : memref<1x32xf32, #tpu.memory_space<vmem>>, vector<1x32xf32>
    %5 = vector.broadcast %4 : vector<1x32xf32> to vector<8x32xf32>
    %6 = arith.addf %3, %5 : vector<8x32xf32>
    %cst_5 = arith.constant 0.000000e+00 : f32
    %7 = vector.broadcast %cst_5 : f32 to vector<8x32xf32>
    %8 = arith.maximumf %6, %7 : vector<8x32xf32>
    %9 = arith.truncf %8 : vector<8x32xf32> to vector<8x32xbf16>
    %c0_6 = arith.constant 0 : index
    %c0_7 = arith.constant 0 : index
    %10 = vector.load %arg4[%c0_6, %c0_7] : memref<32x128xbf16, #tpu.memory_space<vmem>>, vector<32x128xbf16>
    %cst_8 = arith.constant dense<0.000000e+00> : vector<8x128xf32>
    %11 = tpu.matmul %9, %10, %cst_8 {dimension_numbers = #tpu.dot_dimension_numbers<[1], [0], [0], [1], [0, 0, 1, 1], [], []>} : vector<8x32xbf16>, vector<32x128xbf16>, vector<8x128xf32> -> vector<8x128xf32>
    %c0_9 = arith.constant 0 : index
    %c0_10 = arith.constant 0 : index
    %12 = vector.load %arg5[%c0_9, %c0_10] : memref<1x128xf32, #tpu.memory_space<vmem>>, vector<1x128xf32>
    %13 = vector.broadcast %12 : vector<1x128xf32> to vector<8x128xf32>
    %14 = arith.addf %11, %13 : vector<8x128xf32>
    %c0_11 = arith.constant 0 : index
    %c0_12 = arith.constant 0 : index
    %15 = vector.load %arg6[%c0_11, %c0_12] : memref<8x128xf32, #tpu.memory_space<vmem>>, vector<8x128xf32>
    tpu.vector_store %arg6[%c0_11, %c0_12], %14 {strides = array<i32>} : memref<8x128xf32, #tpu.memory_space<vmem>>, vector<8x128xf32>,
    return
  }
  func.func @transform_0(%arg0: i32) -> (i32, i32) {
    %c0_i32 = arith.constant 0 : i32
    %c0_i32_0 = arith.constant 0 : i32
    return %arg0, %c0_i32 : i32, i32
  }
  func.func @transform_1(%arg0: i32) -> (i32, i32) {
    %c0_i32 = arith.constant 0 : i32
    %c0_i32_0 = arith.constant 0 : i32
    %c0_i32_1 = arith.constant 0 : i32
    return %c0_i32, %c0_i32_0 : i32, i32
  }
  func.func @transform_2(%arg0: i32) -> (i32, i32) {
    %c0_i32 = arith.constant 0 : i32
    %c0_i32_0 = arith.constant 0 : i32
    %c0_i32_1 = arith.constant 0 : i32
    return %c0_i32, %c0_i32_0 : i32, i32
  }
  func.func @transform_3(%arg0: i32) -> (i32, i32) {
    %c0_i32 = arith.constant 0 : i32
    %c0_i32_0 = arith.constant 0 : i32
    %c0_i32_1 = arith.constant 0 : i32
    return %c0_i32, %c0_i32_0 : i32, i32
  }
  func.func @transform_4(%arg0: i32) -> (i32, i32) {
    %c0_i32 = arith.constant 0 : i32
    %c0_i32_0 = arith.constant 0 : i32
    %c0_i32_1 = arith.constant 0 : i32
    return %c0_i32, %c0_i32_0 : i32, i32
  }
  func.func @transform_5(%arg0: i32) -> (i32, i32) {
    %c0_i32 = arith.constant 0 : i32
    %c0_i32_0 = arith.constant 0 : i32
    return %arg0, %c0_i32 : i32, i32
  }
}

</mosaic_0001>

<llo_original>
// kernel: reward_model_forward.1
$region0: #{reward_model_forward.1}
  #allocation0 [shape = 'u32[]', space=smem, size = 0x4, offset = 0x4, fixed_abs, tag = 'smem constant byte address 0x4 - core index']
  #allocation1 [shape = 'u32[144,128]{1,0:T(1,128)}', space=vmem, size = 0x12000, scoped, tag = 'internal scratch']
  %s0 = inlined_call_operand.vmem [shape: f32[8,16], index: 0, kind: input, shape index: {}]
  %s1 = inlined_call_operand.vmem [shape: bf16[16,32], index: 1, kind: input, shape index: {}]
  %s2 = inlined_call_operand.vmem [shape: f32[1,32], index: 2, kind: input, shape index: {}]
  %s3 = inlined_call_operand.vmem [shape: bf16[32,128], index: 3, kind: input, shape index: {}]
  %s4 = inlined_call_operand.vmem [shape: f32[1,128], index: 4, kind: input, shape index: {}]
  %s5 = inlined_call_operand.vmem [shape: f32[8,128], index: 5, kind: output, shape index: {}]
  %s6 = sld [smem:[#allocation0]]
  $region30: #{reward_model_forward.1} parent=0
    _
  %s8 = ssub.s32 1, %s6
  %s9 = scalar_select 0, %s8, %s6
  // Predicated region
  $region2: #{reward_model_forward.1} parent=0 // pred_check
    _
  $region3: #{reward_model_forward.1} parent=0 // pred_check_branch
    %11 = sbr.rel (0) target = $region5
  $region4: #{reward_model_forward.1} parent=0 // pred_region
    _
  $region5: #{reward_model_forward.1} parent=0 // pred_fallthru
    _
  // Predicated region
  $region6: #{reward_model_forward.1} parent=0 // pred_check
    _
  $region7: #{reward_model_forward.1} parent=0 // pred_check_branch
    %13 = sbr.rel (0) target = $region9
  $region8: #{reward_model_forward.1} parent=0 // pred_region
    _
  $region9: #{reward_model_forward.1} parent=0 // pred_fallthru
    _
  // Predicated region
  $region10: #{reward_model_forward.1} parent=0 // pred_check
    _
  $region11: #{reward_model_forward.1} parent=0 // pred_check_branch
    %15 = sbr.rel (0) target = $region13
  $region12: #{reward_model_forward.1} parent=0 // pred_region
    _
  $region13: #{reward_model_forward.1} parent=0 // pred_fallthru
    _
  // Predicated region
  $region14: #{reward_model_forward.1} parent=0 // pred_check
    _
  $region15: #{reward_model_forward.1} parent=0 // pred_check_branch
    %17 = sbr.rel (0) target = $region17
  $region16: #{reward_model_forward.1} parent=0 // pred_region
    _
  $region17: #{reward_model_forward.1} parent=0 // pred_fallthru
    _
  // Predicated region
  $region18: #{reward_model_forward.1} parent=0 // pred_check
    _
  $region19: #{reward_model_forward.1} parent=0 // pred_check_branch
    %19 = sbr.rel (0) target = $region21
  $region20: #{reward_model_forward.1} parent=0 // pred_region
    _
  $region21: #{reward_model_forward.1} parent=0 // pred_fallthru
    _
  %v21 = vld [vmem:[%s0] sm:$0xff]
  %v22 = vpack.c.bf16 %v21, %v21
  %v23 = vld [vmem:[%s1] sm:$0xf]
  %v24 = vld [vmem:[%s1 + $0x4] sm:$0xf]
  %v25 = vld [vmem:[%s2] sm:$0x1]
  %v27 = vlaneseq
  %v28 = vshrl.u32 %v27, 7
  %v29 = vsub.s32 0, %v28
  %v30 = vrot.slane %v25, %v29
  %v34 = vunpack.c.l.b16 %v23
  %v35 = vunpack.c.l.b16 %v24
  %v36 = vpack.c.b16 %v35, %v34
  %vm38 = vcmask 130048
  %v40 = vsel %vm38, %v22, 0
  %42 = vmatprep.subr.bf16.mxu0 0
  %43 = vmatpush1.bf16.msra.mxu0 %v36
  %44 = vmatprep.subr.bf16.mxu0 0
  %45 = vmatpush1.bf16.msra.mxu0 0
  %46 = vmatprep.subr.bf16.mxu0 0
  %47 = vmatpush1.bf16.msra.mxu0 0
  %48 = vmatprep.subr.bf16.mxu0 0
  %49 = vmatpush1.bf16.msra.mxu0 0
  %50 = vmatprep.subr.bf16.mxu0 0
  %51 = vmatpush1.bf16.msra.mxu0 0
  %52 = vmatprep.subr.bf16.mxu0 0
  %53 = vmatpush1.bf16.msra.mxu0 0
  %54 = vmatprep.subr.bf16.mxu0 0
  %55 = vmatpush1.bf16.msra.mxu0 0
  %56 = vmatprep.subr.bf16.mxu0 0
  %57 = vmatpush1.bf16.msra.mxu0 0
  %58 = vmatprep.subr.bf16.mxu0 0
  %59 = vmatpush1.bf16.msra.mxu0 0
  %60 = vmatprep.subr.bf16.mxu0 0
  %61 = vmatpush1.bf16.msra.mxu0 0
  %62 = vmatprep.subr.bf16.mxu0 0
  %63 = vmatpush1.bf16.msra.mxu0 0
  %64 = vmatprep.subr.bf16.mxu0 0
  %65 = vmatpush1.bf16.msra.mxu0 0
  %66 = vmatprep.subr.bf16.mxu0 0
  %67 = vmatpush1.bf16.msra.mxu0 0
  %68 = vmatprep.subr.bf16.mxu0 0
  %69 = vmatpush1.bf16.msra.mxu0 0
  %70 = vmatprep.subr.bf16.mxu0 0
  %71 = vmatpush1.bf16.msra.mxu0 0
  %72 = vmatprep.subr.bf16.mxu0 0
  %73 = vmatpush1.bf16.msra.mxu0 0
  %74 = vmatprep.mubr.bf16.mxu0 0
  %75 = vmatmul.mubr.bf16.gmra.mrb[0].mxu0 %v40
  %v76 = vpop.f32.mrb[0].mxu0
  %v77 = vadd.f32 %v30, %v76
  %v78 = vpop.f32.mrb[0].mxu0
  %v79 = vpop.f32.mrb[0].mxu0
  %v80 = vpop.f32.mrb[0].mxu0
  %81 = vdwg.mxu0
  %v82 = vmax.f32 %v77, 0.0
  %v83 = vpack.c.bf16 %v82, %v82
  %v84 = vld [vmem:[%s3] sm:$0xf]
  %v85 = vld [vmem:[%s3 + $0x4] sm:$0xf]
  %v86 = vld [vmem:[%s3 + $0x8] sm:$0xf]
  %v87 = vld [vmem:[%s3 + $0xc] sm:$0xf]
  %v88 = vld [vmem:[%s4] sm:$0x1]
  %v90 = vlaneseq
  %v91 = vshrl.u32 %v90, 7
  %v92 = vsub.s32 0, %v91
  %v93 = vrot.slane %v88, %v92
  %v99 = vunpack.c.l.b16 %v84
  %v100 = vunpack.c.l.b16 %v85
  %v101 = vunpack.c.l.b16 %v86
  %v102 = vunpack.c.l.b16 %v87
  %v103 = vpack.c.b16 %v100, %v99
  %v104 = vpack.c.b16 %v102, %v101
  %vm107 = vcmask 261120
  %v109 = vsel %vm107, %v83, 0
  %111 = vmatprep.subr.bf16.mxu0 0
  %112 = vmatpush1.bf16.msra.mxu0 %v103
  %113 = vmatprep.subr.bf16.mxu0 0
  %114 = vmatpush1.bf16.msra.mxu0 %v104
  %115 = vmatprep.subr.bf16.mxu0 0
  %116 = vmatpush1.bf16.msra.mxu0 0
  %117 = vmatprep.subr.bf16.mxu0 0
  %118 = vmatpush1.bf16.msra.mxu0 0
  %119 = vmatprep.subr.bf16.mxu0 0
  %120 = vmatpush1.bf16.msra.mxu0 0
  %121 = vmatprep.subr.bf16.mxu0 0
  %122 = vmatpush1.bf16.msra.mxu0 0
  %123 = vmatprep.subr.bf16.mxu0 0
  %124 = vmatpush1.bf16.msra.mxu0 0
  %125 = vmatprep.subr.bf16.mxu0 0
  %126 = vmatpush1.bf16.msra.mxu0 0
  %127 = vmatprep.subr.bf16.mxu0 0
  %128 = vmatpush1.bf16.msra.mxu0 0
  %129 = vmatprep.subr.bf16.mxu0 0
  %130 = vmatpush1.bf16.msra.mxu0 0
  %131 = vmatprep.subr.bf16.mxu0 0
  %132 = vmatpush1.bf16.msra.mxu0 0
  %133 = vmatprep.subr.bf16.mxu0 0
  %134 = vmatpush1.bf16.msra.mxu0 0
  %135 = vmatprep.subr.bf16.mxu0 0
  %136 = vmatpush1.bf16.msra.mxu0 0
  %137 = vmatprep.subr.bf16.mxu0 0
  %138 = vmatpush1.bf16.msra.mxu0 0
  %139 = vmatprep.subr.bf16.mxu0 0
  %140 = vmatpush1.bf16.msra.mxu0 0
  %141 = vmatprep.subr.bf16.mxu0 0
  %142 = vmatpush1.bf16.msra.mxu0 0
  %143 = vmatprep.mubr.bf16.mxu0 0
  %144 = vmatmul.mubr.bf16.gmra.mrb[0].mxu0 %v109
  %v145 = vpop.f32.mrb[0].mxu0
  %v146 = vadd.f32 %v93, %v145
  %v147 = vpop.f32.mrb[0].mxu0
  %v148 = vpop.f32.mrb[0].mxu0
  %v149 = vpop.f32.mrb[0].mxu0
  %150 = vdwg.mxu0
  %151 = vst [vmem:[%s5] sm:$0xff] %v146
  // Predicated region
  $region22: #{reward_model_forward.1} parent=0 // pred_check
    _
  $region23: #{reward_model_forward.1} parent=0 // pred_check_branch
    %153 = sbr.rel (0) target = $region25
  $region24: #{reward_model_forward.1} parent=0 // pred_region
    _
  $region25: #{reward_model_forward.1} parent=0 // pred_fallthru
    _
  // Predicated region
  $region26: #{reward_model_forward.1} parent=0 // pred_check
    _
  $region27: #{reward_model_forward.1} parent=0 // pred_check_branch
    %155 = sbr.rel (0) target = $region29
  $region28: #{reward_model_forward.1} parent=0 // pred_region
    _
  $region29: #{reward_model_forward.1} parent=0 // pred_fallthru
    _

// kernel: reward_model_forward.1
$region0: #{reward_model_forward.1}
  #allocation0 [shape = 'u32[]', space=smem, size = 0x4, offset = 0x4, fixed_abs, tag = 'smem constant byte address 0x4 - core index']
  #allocation1 [shape = 'u32[144,128]{1,0:T(1,128)}', space=vmem, size = 0x12000, scoped, tag = 'internal scratch']
  %s0 = inlined_call_operand.vmem [shape: f32[8,16], index: 0, kind: input, shape index: {}]
  %s1 = inlined_call_operand.vmem [shape: bf16[16,32], index: 1, kind: input, shape index: {}]
  %s2 = inlined_call_operand.vmem [shape: f32[1,32], index: 2, kind: input, shape index: {}]
  %s3 = inlined_call_operand.vmem [shape: bf16[32,128], index: 3, kind: input, shape index: {}]
  %s4 = inlined_call_operand.vmem [shape: f32[1,128], index: 4, kind: input, shape index: {}]
  %s5 = inlined_call_operand.vmem [shape: f32[8,128], index: 5, kind: output, shape index: {}]
  %s6 = sld [smem:[#allocation0]]
  $region30: #{reward_model_forward.1} parent=0
    _
  %s8 = ssub.s32 1, %s6
  %s9 = scalar_select 0, %s8, %s6
  // Predicated region
  $region2: #{reward_model_forward.1} parent=0 // pred_check
    _
  $region3: #{reward_model_forward.1} parent=0 // pred_check_branch
    %11 = sbr.rel (0) target = $region5
  $region4: #{reward_model_forward.1} parent=0 // pred_region
    _
  $region5: #{reward_model_forward.1} parent=0 // pred_fallthru
    _
  // Predicated region
  $region6: #{reward_model_forward.1} parent=0 // pred_check
    _
  $region7: #{reward_model_forward.1} parent=0 // pred_check_branch
    %13 = sbr.rel (0) target = $region9
  $region8: #{reward_model_forward.1} parent=0 // pred_region
    _
  $region9: #{reward_model_forward.1} parent=0 // pred_fallthru
    _
  // Predicated region
  $region10: #{reward_model_forward.1} parent=0 // pred_check
    _
  $region11: #{reward_model_forward.1} parent=0 // pred_check_branch
    %15 = sbr.rel (0) target = $region13
  $region12: #{reward_model_forward.1} parent=0 // pred_region
    _
  $region13: #{reward_model_forward.1} parent=0 // pred_fallthru
    _
  // Predicated region
  $region14: #{reward_model_forward.1} parent=0 // pred_check
    _
  $region15: #{reward_model_forward.1} parent=0 // pred_check_branch
    %17 = sbr.rel (0) target = $region17
  $region16: #{reward_model_forward.1} parent=0 // pred_region
    _
  $region17: #{reward_model_forward.1} parent=0 // pred_fallthru
    _
  // Predicated region
  $region18: #{reward_model_forward.1} parent=0 // pred_check
    _
  $region19: #{reward_model_forward.1} parent=0 // pred_check_branch
    %19 = sbr.rel (0) target = $region21
  $region20: #{reward_model_forward.1} parent=0 // pred_region
    _
  $region21: #{reward_model_forward.1} parent=0 // pred_fallthru
    _
  %v21 = vld [vmem:[%s0] sm:$0xff]
  %v22 = vpack.c.bf16 %v21, %v21
  %v23 = vld [vmem:[%s1] sm:$0xf]
  %v24 = vld [vmem:[%s1 + $0x4] sm:$0xf]
  %v25 = vld [vmem:[%s2] sm:$0x1]
  %v27 = vlaneseq
  %v28 = vshrl.u32 %v27, 7
  %v29 = vsub.s32 0, %v28
  %v30 = vrot.slane %v25, %v29
  %v34 = vunpack.c.l.b16 %v23
  %v35 = vunpack.c.l.b16 %v24
  %v36 = vpack.c.b16 %v35, %v34
  %vm38 = vcmask 130048
  %v40 = vsel %vm38, %v22, 0
  %42 = vmatprep.subr.bf16.mxu0 0
  %43 = vmatpush1.bf16.msra.mxu0 %v36
  %44 = vmatprep.subr.bf16.mxu0 0
  %45 = vmatpush1.bf16.msra.mxu0 0
  %46 = vmatprep.subr.bf16.mxu0 0
  %47 = vmatpush1.bf16.msra.mxu0 0
  %48 = vmatprep.subr.bf16.mxu0 0
  %49 = vmatpush1.bf16.msra.mxu0 0
  %50 = vmatprep.subr.bf16.mxu0 0
  %51 = vmatpush1.bf16.msra.mxu0 0
  %52 = vmatprep.subr.bf16.mxu0 0
  %53 = vmatpush1.bf16.msra.mxu0 0
  %54 = vmatprep.subr.bf16.mxu0 0
  %55 = vmatpush1.bf16.msra.mxu0 0
  %56 = vmatprep.subr.bf16.mxu0 0
  %57 = vmatpush1.bf16.msra.mxu0 0
  %58 = vmatprep.subr.bf16.mxu0 0
  %59 = vmatpush1.bf16.msra.mxu0 0
  %60 = vmatprep.subr.bf16.mxu0 0
  %61 = vmatpush1.bf16.msra.mxu0 0
  %62 = vmatprep.subr.bf16.mxu0 0
  %63 = vmatpush1.bf16.msra.mxu0 0
  %64 = vmatprep.subr.bf16.mxu0 0
  %65 = vmatpush1.bf16.msra.mxu0 0
  %66 = vmatprep.subr.bf16.mxu0 0
  %67 = vmatpush1.bf16.msra.mxu0 0
  %68 = vmatprep.subr.bf16.mxu0 0
  %69 = vmatpush1.bf16.msra.mxu0 0
  %70 = vmatprep.subr.bf16.mxu0 0
  %71 = vmatpush1.bf16.msra.mxu0 0
  %72 = vmatprep.subr.bf16.mxu0 0
  %73 = vmatpush1.bf16.msra.mxu0 0
  %74 = vmatprep.mubr.bf16.mxu0 0
  %75 = vmatmul.mubr.bf16.gmra.mrb[0].mxu0 %v40
  %v76 = vpop.f32.mrb[0].mxu0
  %v77 = vadd.f32 %v30, %v76
  %v78 = vpop.f32.mrb[0].mxu0
  %v79 = vpop.f32.mrb[0].mxu0
  %v80 = vpop.f32.mrb[0].mxu0
  %81 = vdwg.mxu0
  %v82 = vmax.f32 %v77, 0.0
  %v83 = vpack.c.bf16 %v82, %v82
  %v84 = vld [vmem:[%s3] sm:$0xf]
  %v85 = vld [vmem:[%s3 + $0x4] sm:$0xf]
  %v86 = vld [vmem:[%s3 + $0x8] sm:$0xf]
  %v87 = vld [vmem:[%s3 + $0xc] sm:$0xf]
  %v88 = vld [vmem:[%s4] sm:$0x1]
  %v90 = vlaneseq
  %v91 = vshrl.u32 %v90, 7
  %v92 = vsub.s32 0, %v91
  %v93 = vrot.slane %v88, %v92
  %v99 = vunpack.c.l.b16 %v84
  %v100 = vunpack.c.l.b16 %v85
  %v101 = vunpack.c.l.b16 %v86
  %v102 = vunpack.c.l.b16 %v87
  %v103 = vpack.c.b16 %v100, %v99
  %v104 = vpack.c.b16 %v102, %v101
  %vm107 = vcmask 261120
  %v109 = vsel %vm107, %v83, 0
  %111 = vmatprep.subr.bf16.mxu0 0
  %112 = vmatpush1.bf16.msra.mxu0 %v103
  %113 = vmatprep.subr.bf16.mxu0 0
  %114 = vmatpush1.bf16.msra.mxu0 %v104
  %115 = vmatprep.subr.bf16.mxu0 0
  %116 = vmatpush1.bf16.msra.mxu0 0
  %117 = vmatprep.subr.bf16.mxu0 0
  %118 = vmatpush1.bf16.msra.mxu0 0
  %119 = vmatprep.subr.bf16.mxu0 0
  %120 = vmatpush1.bf16.msra.mxu0 0
  %121 = vmatprep.subr.bf16.mxu0 0
  %122 = vmatpush1.bf16.msra.mxu0 0
  %123 = vmatprep.subr.bf16.mxu0 0
  %124 = vmatpush1.bf16.msra.mxu0 0
  %125 = vmatprep.subr.bf16.mxu0 0
  %126 = vmatpush1.bf16.msra.mxu0 0
  %127 = vmatprep.subr.bf16.mxu0 0
  %128 = vmatpush1.bf16.msra.mxu0 0
  %129 = vmatprep.subr.bf16.mxu0 0
  %130 = vmatpush1.bf16.msra.mxu0 0
  %131 = vmatprep.subr.bf16.mxu0 0
  %132 = vmatpush1.bf16.msra.mxu0 0
  %133 = vmatprep.subr.bf16.mxu0 0
  %134 = vmatpush1.bf16.msra.mxu0 0
  %135 = vmatprep.subr.bf16.mxu0 0
  %136 = vmatpush1.bf16.msra.mxu0 0
  %137 = vmatprep.subr.bf16.mxu0 0
  %138 = vmatpush1.bf16.msra.mxu0 0
  %139 = vmatprep.subr.bf16.mxu0 0
  %140 = vmatpush1.bf16.msra.mxu0 0
  %141 = vmatprep.subr.bf16.mxu0 0
  %142 = vmatpush1.bf16.msra.mxu0 0
  %143 = vmatprep.mubr.bf16.mxu0 0
  %144 = vmatmul.mubr.bf16.gmra.mrb[0].mxu0 %v109
  %v145 = vpop.f32.mrb[0].mxu0
  %v146 = vadd.f32 %v93, %v145
  %v147 = vpop.f32.mrb[0].mxu0
  %v148 = vpop.f32.mrb[0].mxu0
  %v149 = vpop.f32.mrb[0].mxu0
  %150 = vdwg.mxu0
  %151 = vst [vmem:[%s5] sm:$0xff] %v146
  // Predicated region
  $region22: #{reward_model_forward.1} parent=0 // pred_check
    _
  $region23: #{reward_model_forward.1} parent=0 // pred_check_branch
    %153 = sbr.rel (0) target = $region25
  $region24: #{reward_model_forward.1} parent=0 // pred_region
    _
  $region25: #{reward_model_forward.1} parent=0 // pred_fallthru
    _
  // Predicated region
  $region26: #{reward_model_forward.1} parent=0 // pred_check
    _
  $region27: #{reward_model_forward.1} parent=0 // pred_check_branch
    %155 = sbr.rel (0) target = $region29
  $region28: #{reward_model_forward.1} parent=0 // pred_region
    _
  $region29: #{reward_model_forward.1} parent=0 // pred_fallthru
    _

</llo_original>
